<compile_context>
chip_gen: v7x
topology: tpu7x:2x2x1
jax: 0.10.0
libtpu: 0.0.40
codegen_flags: <defaults>
</compile_context>

<pallas_src>
import math

import jax
import jax.numpy as jnp
from jax.experimental import pallas as pl
from jax.experimental.pallas import tpu as pltpu


def _fcl_kernel(p_ref, f_ref, b_ref, o_ref):
    """p_ref: (1, CKpad, TILE_M)  patches, contraction-major, lane-dense.
    f_ref: (Cout, CKpad)          synthesized filter bank (resident).
    b_ref: (Cout, 1)              f32 bias.
    o_ref: (1, Cout, TILE_M)      f32 output (lane-dense, unmasked stores)."""
    acc = jnp.dot(f_ref[...], p_ref[0], preferred_element_type=jnp.float32)
    o_ref[0] = acc + b_ref[...]


def _pick_tile_m(n_cols, ck_pad, cout, in_itemsize,
                 vmem_budget=8 * 1024 * 1024, cap=2048):
    """Largest lane tile (multiple of 128) whose double-buffered blocks stay
    well inside VMEM on every chip generation (v7x has only 64 MiB)."""
    per_col = ck_pad * in_itemsize * 2 + cout * 4 * 2   # 2x: double buffering
    t = vmem_budget // max(per_col, 1)
    t = max(128, min(cap, t))
    t = (t // 128) * 128
    t = min(t, pl.cdiv(n_cols, 128) * 128)
    return int(t)


def fcl_forward(x, weights, filters, bias=None, *, stride=1, padding=0,
                groups=1, compute_dtype=jnp.bfloat16):
    """x: (N, Cin, H, W) f32.  weights: (Cout, Cin//groups, F).
    filters: (F, K, K).  Returns (N, Cout, OH, OW) f32 (== conv2d(x, f))."""
    if groups != 1:
        # TODO(synk): grouped conv (groups > 1) not implemented in this kernel.
        raise NotImplementedError("groups != 1 not supported")

    N, Cin, H, W = x.shape
    Cout, _, F = weights.shape
    K = filters.shape[-1]
    KK = K * K
    OH = (H + 2 * padding - K) // stride + 1
    OW = (W + 2 * padding - K) // stride + 1
    OHOW = OH * OW

    CK = Cin * KK
    itemsize = jnp.dtype(compute_dtype).itemsize
    sub = 16 if itemsize == 2 else 8                   # sublane pack of dtype
    CK_pad = pl.cdiv(CK, sub) * sub                    # aligned contraction dim

    # ---- glue: im2col, contraction-major; no data-sized transposes needed.
    xp = jnp.pad(x, ((0, 0), (0, 0),
                     (padding, padding), (padding, padding)))
    cols = []
    for kh in range(K):
        for kw in range(K):
            cols.append(
                xp[:, :, kh:kh + (OH - 1) * stride + 1:stride,
                         kw:kw + (OW - 1) * stride + 1:stride])  # (N,Cin,OH,OW)
    stacked = jnp.stack(cols, axis=2)                  # (N, Cin, KK, OH, OW)

    per_image = OHOW >= 128
    if per_image:
        # Lane dim = per-image OH*OW: kernel writes straight into NCHW order.
        G, L = N, OHOW
        patches = stacked.reshape(N, CK, OHOW)
    else:
        # Tiny spatial maps: merge batch into the lane dim to keep tiles wide.
        G, L = 1, N * OHOW
        patches = jnp.transpose(stacked, (1, 2, 0, 3, 4)).reshape(1, CK, L)

    tile_m = _pick_tile_m(L, CK_pad, Cout, itemsize)
    Lp = pl.cdiv(L, tile_m) * tile_m
    patches = jnp.pad(patches, ((0, 0), (0, CK_pad - CK),
                                (0, Lp - L))).astype(compute_dtype)

    # Filter-bank synthesis (tiny: Cout x Cin*K*K), hoisted out of the kernel.
    fmat = jnp.einsum("oif,ft->oit",
                      weights.astype(jnp.float32),
                      filters.reshape(F, KK).astype(jnp.float32))
    fmat = fmat.reshape(Cout, CK)
    fmat = jnp.pad(fmat, ((0, 0), (0, CK_pad - CK))).astype(compute_dtype)

    b = bias if bias is not None else jnp.zeros((Cout,), jnp.float32)
    b = b.astype(jnp.float32).reshape(Cout, 1)

    cost = pl.CostEstimate(
        flops=2 * G * Lp * CK_pad * Cout,
        transcendentals=0,
        bytes_accessed=(patches.size * itemsize
                        + fmat.size * itemsize
                        + Cout * 4
                        + G * Lp * Cout * 4),
    )

    out = pl.pallas_call(
        _fcl_kernel,
        out_shape=jax.ShapeDtypeStruct((G, Cout, Lp), jnp.float32),
        grid_spec=pltpu.PrefetchScalarGridSpec(
            num_scalar_prefetch=0,
            grid=(G, Lp // tile_m),
            in_specs=[
                pl.BlockSpec((1, CK_pad, tile_m), lambda g, m: (g, 0, m)),
                pl.BlockSpec((Cout, CK_pad), lambda g, m: (0, 0)),
                pl.BlockSpec((Cout, 1), lambda g, m: (0, 0)),
            ],
            out_specs=pl.BlockSpec((1, Cout, tile_m), lambda g, m: (g, 0, m)),
        ),
        compiler_params=pltpu.CompilerParams(
            dimension_semantics=("parallel", "parallel"),
        ),
        cost_estimate=cost,
    )(patches, fmat, b)

    out = out[:, :, :L]
    if per_image:
        return out.reshape(N, Cout, OH, OW)
    out = out.reshape(Cout, N, OH, OW)                 # merged-batch fallback
    return jnp.transpose(out, (1, 0, 2, 3))            # (N, Cout, OH, OW)


if __name__ == "__main__":
    # Module config: FCL(in_ch, out_ch, kernel_size, num_filters, stride, padding)
    in_ch, out_ch, kernel_size, num_filters = 4, 8, 3, 6
    stride, padding, groups, use_bias = 1, 1, 1, False
    N, H, W = 2, 16, 16

    key = jax.random.PRNGKey(0)
    kx, kw, kf = jax.random.split(key, 3)

    # Deterministic init mirroring reset_parameters() ranges.
    stdv1 = 1.0 / math.sqrt(in_ch * kernel_size * kernel_size)
    stdv2 = 1.0 / math.sqrt(num_filters * kernel_size * kernel_size)
    weights = jax.random.uniform(kw, (out_ch, in_ch // groups, num_filters),
                                 jnp.float32, -stdv1, stdv1)
    filters = jax.random.uniform(kf, (num_filters, kernel_size, kernel_size),
                                 jnp.float32, -stdv2, stdv2)
    bias = None  # bias=False in this config

    x = jax.random.normal(kx, (N, in_ch, H, W), jnp.float32)

    out = fcl_forward(x, weights, filters, bias,
                      stride=stride, padding=padding, groups=groups)
    out = jax.block_until_ready(out)

    # Pure-JAX f32 reference of the same forward pass.
    f = jnp.einsum("oif,fkl->oikl", weights, filters)
    ref = jax.lax.conv_general_dilated(
        x, f, window_strides=(stride, stride),
        padding=[(padding, padding), (padding, padding)],
        dimension_numbers=("NCHW", "OIHW", "NCHW"),
    )
    assert out.shape == ref.shape, (out.shape, ref.shape)
    # tolerance accounts for bf16 streaming of patches/filter bank (f32 accum).
    err = float(jnp.max(jnp.abs(out - ref)))
    assert jnp.allclose(out, ref, atol=3e-3, rtol=3e-3), err

    print("KERNEL_OK")
</pallas_src>

<mosaic_0001>
module attributes {stable_mosaic.version = 11 : i64} {
  func.func @_fcl_kernel(%arg0: i32, %arg1: i32, %arg2: memref<1x48x256xbf16, #tpu.memory_space<vmem>>, %arg3: memref<8x48xbf16, #tpu.memory_space<vmem>>, %arg4: memref<8x1xf32, #tpu.memory_space<vmem>>, %arg5: memref<1x8x256xf32, #tpu.memory_space<vmem>>) attributes {dimension_semantics = [#tpu.dimension_semantics<parallel>, #tpu.dimension_semantics<parallel>], iteration_bounds = array<i64: 2, 1>, scalar_prefetch = 0 : i64, scratch_operands = 0 : i64, tpu.core_type = #tpu.core_type<tc>, window_params = [{transform_indices = @transform_0, window_bounds = array<i64: 1, 48, 256>}, {pipeline_mode = #tpu.pipeline_mode<synchronous>, transform_indices = @transform_1, window_bounds = array<i64: 8, 48>}, {pipeline_mode = #tpu.pipeline_mode<synchronous>, transform_indices = @transform_2, window_bounds = array<i64: 8, 1>}, {transform_indices = @transform_3, window_bounds = array<i64: 1, 8, 256>}]} {
    %c0 = arith.constant 0 : index
    %c0_0 = arith.constant 0 : index
    %0 = vector.load %arg3[%c0, %c0_0] : memref<8x48xbf16, #tpu.memory_space<vmem>>, vector<8x48xbf16>
    %c0_1 = arith.constant 0 : index
    %c0_2 = arith.constant 0 : index
    %c0_3 = arith.constant 0 : index
    %1 = vector.load %arg2[%c0_1, %c0_2, %c0_3] : memref<1x48x256xbf16, #tpu.memory_space<vmem>>, vector<1x48x256xbf16>
    %2 = vector.shape_cast %1 : vector<1x48x256xbf16> to vector<48x256xbf16>
    %cst = arith.constant dense<0.000000e+00> : vector<8x256xf32>
    %3 = tpu.matmul %0, %2, %cst {dimension_numbers = #tpu.dot_dimension_numbers<[1], [0], [0], [1], [0, 0, 1, 1], [], []>} : vector<8x48xbf16>, vector<48x256xbf16>, vector<8x256xf32> -> vector<8x256xf32>
    %c0_4 = arith.constant 0 : index
    %c0_5 = arith.constant 0 : index
    %4 = vector.load %arg4[%c0_4, %c0_5] : memref<8x1xf32, #tpu.memory_space<vmem>>, vector<8x1xf32>
    %5 = vector.broadcast %4 : vector<8x1xf32> to vector<8x256xf32>
    %6 = arith.addf %3, %5 : vector<8x256xf32>
    %c0_6 = arith.constant 0 : index
    %c0_7 = arith.constant 0 : index
    %c0_8 = arith.constant 0 : index
    %7 = vector.load %arg5[%c0_6, %c0_7, %c0_8] : memref<1x8x256xf32, #tpu.memory_space<vmem>>, vector<1x8x256xf32>
    %8 = vector.shape_cast %7 : vector<1x8x256xf32> to vector<8x256xf32>
    %9 = vector.shape_cast %6 : vector<8x256xf32> to vector<1x8x256xf32>
    tpu.vector_store %arg5[%c0_6, %c0_7, %c0_8], %9 {strides = array<i32>} : memref<1x8x256xf32, #tpu.memory_space<vmem>>, vector<1x8x256xf32>,
    return
  }
  func.func @transform_0(%arg0: i32, %arg1: i32) -> (i32, i32, i32) {
    %c0_i32 = arith.constant 0 : i32
    %c0_i32_0 = arith.constant 0 : i32
    return %arg0, %c0_i32, %arg1 : i32, i32, i32
  }
  func.func @transform_1(%arg0: i32, %arg1: i32) -> (i32, i32) {
    %c0_i32 = arith.constant 0 : i32
    %c0_i32_0 = arith.constant 0 : i32
    %c0_i32_1 = arith.constant 0 : i32
    return %c0_i32, %c0_i32_0 : i32, i32
  }
  func.func @transform_2(%arg0: i32, %arg1: i32) -> (i32, i32) {
    %c0_i32 = arith.constant 0 : i32
    %c0_i32_0 = arith.constant 0 : i32
    %c0_i32_1 = arith.constant 0 : i32
    return %c0_i32, %c0_i32_0 : i32, i32
  }
  func.func @transform_3(%arg0: i32, %arg1: i32) -> (i32, i32, i32) {
    %c0_i32 = arith.constant 0 : i32
    %c0_i32_0 = arith.constant 0 : i32
    return %arg0, %c0_i32, %arg1 : i32, i32, i32
  }
}

</mosaic_0001>

<llo_original>
// kernel: tpu_custom_call.1
$region0: #{tpu_custom_call.1}
  #allocation0 [shape = 'u32[]', space=smem, size = 0x4, offset = 0x4, fixed_abs, tag = 'smem constant byte address 0x4 - core index']
  #allocation1 [shape = 'u32[144,128]{1,0:T(1,128)}', space=vmem, size = 0x12000, scoped, tag = 'internal scratch']
  %s0 = inlined_call_operand.hbm [shape: bf16[2,48,256], index: 0, kind: input, shape index: {}]
  %s1 = inlined_call_operand.vmem [shape: bf16[8,48], index: 1, kind: input, shape index: {}]
  %s2 = inlined_call_operand.vmem [shape: f32[8,1], index: 2, kind: input, shape index: {}]
  %s3 = inlined_call_operand.hbm [shape: f32[2,8,256], index: 3, kind: output, shape index: {}]
  %s4 = sld [smem:[#allocation0]]
  $region49: #{tpu_custom_call.1} parent=0
    _
  %s6 = ssub.s32 1, %s4
  %s7 = scalar_select 0, %s6, %s4
  $region1: #{tpu_custom_call.1} parent=0
    #allocation2 [shape = 'u8[49152]{0}', space=vmem, size = 0xc000, scoped, tag = 'input window, operand 0']
    #allocation3 [shape = 's32[2]{0}', space=sflag, size = 0x8, scoped, tag = 'scoped memory for tpu_custom_call.1']
    #allocation4 [shape = 's32[2]{0}', space=sflag, size = 0x8, scoped, tag = 'scoped memory for tpu_custom_call.1']
    #allocation5 [shape = 'u8[16384]{0}', space=vmem, size = 0x4000, scoped, tag = 'output window, operand 0']
    %8 = vsyncpa [#allocation3], 0
    %s9 = scalar_lea.sflag [#allocation3], 1
    %10 = vsyncpa %s9, 0
    %11 = vsyncpa [#allocation4], 0
    %s12 = scalar_lea.sflag [#allocation4], 1
    %13 = vsyncpa %s12, 0
    loop: start=0, step=1, limit=4
    $region2: #{tpu_custom_call.1} parent=1 // loop_pre_header
      _
    $region3: #{tpu_custom_call.1} parent=1 // loop_header
      %s15 = sphi 0, %s19
      %p16 = scmp.ge.s32.totalorder %s15, 4
      %s22 = sphi 0, %s34
      %s23 = sphi 0, %s30
      %s24 = sphi 0, %s22
      %s25 = sphi 0, %s23
      %s26 = sphi 0, %s24
      %s27 = sphi 0, %s25
      %s39 = sphi 0, %s41
      %s42 = sphi 0, %s39
      %s43 = sphi 0, %s42
      %s59 = sphi 0, %s43
      %s63 = sphi 0, %s63
      %s65 = sphi 0, %s63
      %s66 = sphi 0, %s65
      %s80 = sphi 0, %s66
      %s84 = sphi 0, %s84
      %s86 = sphi 0, %s84
      %s87 = sphi 0, %s86
      %s101 = sphi 0, %s87
      %s109 = sphi 0, %s111
      %s112 = sphi 0, %s109
      %s113 = sphi 0, %s112
      %s129 = sphi 0, %s113
    $region4: #{tpu_custom_call.1} parent=1 // loop_header_branch
      %18 = sbr.rel (%p16) target = $region8
    $region5: #{tpu_custom_call.1} parent=1 // loop_body
      %s20 = ssub.s32 %s15, 1
      %s21 = ssub.s32 %s15, 2
      %s28 = sadd.s32 1, %s23
      %p29 = scmp.ge.s32.totalorder %s28, 1
      %s30 = scalar_select %p29, 0, %s28
      %s31 = sadd.s32 1, %s22
      %s32 = scalar_select %p29, %s31, %s22
      %p33 = scmp.ge.s32.totalorder %s32, 2
      %s34 = scalar_select %p33, 0, %s32
      %s35 = ssub.s32 %s22, %s34
      %s36 = ssub.s32 %s23, %s30
      %s37 = sor.u32 %s35, %s36
      %p38 = scmp.eq.s32.totalorder %s37, 0
      %s40 = sadd.s32 %s39, 1
      %s41 = scalar_select %p38, %s39, %s40
      %p44 = pneg %p38
      %p45 = scmp.eq.s32.totalorder %s15, 1
      %p46 = por %p44, %p45
      %p47 = scmp.ne.s32.totalorder %s39, %s42
      %p48 = scmp.eq.s32.totalorder %s15, 0
      %p49 = por %p47, %p48
      %p50 = scmp.ne.s32.totalorder %s39, %s42
      %p51 = scmp.eq.s32.totalorder %s20, 1
      %p52 = por %p50, %p51
      %p53 = scmp.ne.s32.totalorder %s42, %s43
      %p54 = scmp.eq.s32.totalorder %s20, 0
      %p55 = por %p53, %p54
      %p56 = scmp.ne.s32.totalorder %s42, %s43
      %p57 = scmp.eq.s32.totalorder %s21, 1
      %p58 = por %p56, %p57
      %p60 = scmp.ne.s32.totalorder %s43, %s59
      %p61 = scmp.eq.s32.totalorder %s21, 0
      %p62 = por %p60, %p61
      %s64 = sadd.s32 %s63, 1
      %p67 = scmp.eq.s32.totalorder %s15, 1
      %p68 = scmp.ne.s32.totalorder %s63, %s65
      %p69 = scmp.eq.s32.totalorder %s15, 0
      %p70 = por %p68, %p69
      %p71 = scmp.ne.s32.totalorder %s63, %s65
      %p72 = scmp.eq.s32.totalorder %s20, 1
      %p73 = por %p71, %p72
      %p74 = scmp.ne.s32.totalorder %s65, %s66
      %p75 = scmp.eq.s32.totalorder %s20, 0
      %p76 = por %p74, %p75
      %p77 = scmp.ne.s32.totalorder %s65, %s66
      %p78 = scmp.eq.s32.totalorder %s21, 1
      %p79 = por %p77, %p78
      %p81 = scmp.ne.s32.totalorder %s66, %s80
      %p82 = scmp.eq.s32.totalorder %s21, 0
      %p83 = por %p81, %p82
      %s85 = sadd.s32 %s84, 1
      %p88 = scmp.eq.s32.totalorder %s15, 1
      %p89 = scmp.ne.s32.totalorder %s84, %s86
      %p90 = scmp.eq.s32.totalorder %s15, 0
      %p91 = por %p89, %p90
      %p92 = scmp.ne.s32.totalorder %s84, %s86
      %p93 = scmp.eq.s32.totalorder %s20, 1
      %p94 = por %p92, %p93
      %p95 = scmp.ne.s32.totalorder %s86, %s87
      %p96 = scmp.eq.s32.totalorder %s20, 0
      %p97 = por %p95, %p96
      %p98 = scmp.ne.s32.totalorder %s86, %s87
      %p99 = scmp.eq.s32.totalorder %s21, 1
      %p100 = por %p98, %p99
      %p102 = scmp.ne.s32.totalorder %s87, %s101
      %p103 = scmp.eq.s32.totalorder %s21, 0
      %p104 = por %p102, %p103
      %s105 = ssub.s32 %s22, %s34
      %s106 = ssub.s32 %s23, %s30
      %s107 = sor.u32 %s105, %s106
      %p108 = scmp.eq.s32.totalorder %s107, 0
      %s110 = sadd.s32 %s109, 1
      %s111 = scalar_select %p108, %s109, %s110
      %p114 = pneg %p108
      %p115 = scmp.eq.s32.totalorder %s15, 1
      %p116 = por %p114, %p115
      %p117 = scmp.ne.s32.totalorder %s109, %s112
      %p118 = scmp.eq.s32.totalorder %s15, 0
      %p119 = por %p117, %p118
      %p120 = scmp.ne.s32.totalorder %s109, %s112
      %p121 = scmp.eq.s32.totalorder %s20, 1
      %p122 = por %p120, %p121
      %p123 = scmp.ne.s32.totalorder %s112, %s113
      %p124 = scmp.eq.s32.totalorder %s20, 0
      %p125 = por %p123, %p124
      %p126 = scmp.ne.s32.totalorder %s112, %s113
      %p127 = scmp.eq.s32.totalorder %s21, 1
      %p128 = por %p126, %p127
      %p130 = scmp.ne.s32.totalorder %s113, %s129
      %p131 = scmp.eq.s32.totalorder %s21, 0
      %p132 = por %p130, %p131
      %p133 = scmp.le.s32.totalorder 1, %s15
      %p134 = scmp.lt.s32.totalorder %s15, 3
      %p135 = pnand %p133, %p134
      %p136 = pneg %p135
      // Predicated region
      $region9: #{tpu_custom_call.1} parent=5 // pred_check
        _
      $region10: #{tpu_custom_call.1} parent=5 // pred_check_branch
        %138 = sbr.rel (%p135) target = $region12
      $region11: #{tpu_custom_call.1} parent=5 // pred_region
        %s139 = ssub.s32 %s15, 1
        // Predicated region
        $region13: #{tpu_custom_call.1} parent=11 // pred_check
          %p140 = pneg %p76
        $region14: #{tpu_custom_call.1} parent=11 // pred_check_branch
          %142 = sbr.rel (%p140) target = $region16
        $region15: #{tpu_custom_call.1} parent=11 // pred_region
          _
        $region16: #{tpu_custom_call.1} parent=11 // pred_fallthru
          _
        // Predicated region
        $region17: #{tpu_custom_call.1} parent=11 // pred_check
          %p143 = pneg %p97
        $region18: #{tpu_custom_call.1} parent=11 // pred_check_branch
          %145 = sbr.rel (%p143) target = $region20
        $region19: #{tpu_custom_call.1} parent=11 // pred_region
          _
        $region20: #{tpu_custom_call.1} parent=11 // pred_fallthru
          _
      $region12: #{tpu_custom_call.1} parent=5 // pred_fallthru
        _
      %p146 = scmp.lt.s32.totalorder %s15, 2
      // Predicated region
      $region21: #{tpu_custom_call.1} parent=5 // pred_check
        %p147 = pneg %p146
      $region22: #{tpu_custom_call.1} parent=5 // pred_check_branch
        %149 = sbr.rel (%p147) target = $region24
      $region23: #{tpu_custom_call.1} parent=5 // pred_region
        // Predicated region
        $region25: #{tpu_custom_call.1} parent=23 // pred_check
          %p150 = pneg %p49
        $region26: #{tpu_custom_call.1} parent=23 // pred_check_branch
          %152 = sbr.rel (%p150) target = $region28
        $region27: #{tpu_custom_call.1} parent=23 // pred_region
          %s153 = sand.u32 %s39, 1
          %s154 = scalar_lea.sflag [#allocation3], %s153
          %s155 = sand.u32 %s39, 1
          %s156 = smul.addr %s155, 48
          %s157 = scalar_lea.vmem [#allocation2], %s156
          %s158 = smul.u32 2, %s23
          %s160 = ssub.s32 768, 768
          %161 = vsyncadd %s154, %s160
          %s162 = smul.addr %s22, 12
          %s163 = sadd.s32 %s158, %s162
          %s164 = smul.addr %s163, 64
          %s165 = scalar_lea.hbm %s0, %s164
          %s166 = sshll.u32 %s157, 4
          %s167 = int_to_ptr.vmem [resolvable:$true] %s166
          %172 = dma.hbm_to_vmem [thread:$0]  %s165, 768, %s167, %s154, 128, 128, 8
        $region28: #{tpu_custom_call.1} parent=23 // pred_fallthru
          _
      $region24: #{tpu_custom_call.1} parent=5 // pred_fallthru
        _
      %p173 = scmp.le.s32.totalorder 1, %s15
      %p174 = scmp.lt.s32.totalorder %s15, 3
      %p175 = pnand %p173, %p174
      %p176 = pneg %p175
      // Predicated region
      $region29: #{tpu_custom_call.1} parent=5 // pred_check
        _
      $region30: #{tpu_custom_call.1} parent=5 // pred_check_branch
        %178 = sbr.rel (%p175) target = $region32
      $region31: #{tpu_custom_call.1} parent=5 // pred_region
        %s179 = ssub.s32 %s15, 1
        %s180 = sand.u32 %s42, 1
        %s181 = scalar_lea.sflag [#allocation3], %s180
        %s182 = sand.u32 %s42, 1
        %s183 = smul.addr %s182, 48
        %s184 = scalar_lea.vmem [#allocation2], %s183
        // Predicated region
        $region33: #{tpu_custom_call.1} parent=31 // pred_check
          %p185 = pneg %p55
        $region34: #{tpu_custom_call.1} parent=31 // pred_check_branch
          %187 = sbr.rel (%p185) target = $region36
        $region35: #{tpu_custom_call.1} parent=31 // pred_region
          %188 = dma.done %s181, 768
        $region36: #{tpu_custom_call.1} parent=31 // pred_fallthru
          _
        %s189 = sand.u32 %s42, 1
        %s190 = scalar_lea.sflag [#allocation3], %s189
        %s191 = sand.u32 %s42, 1
        %s192 = smul.addr %s191, 48
        %s193 = scalar_lea.vmem [#allocation2], %s192
        %p194 = pneg %p55
        %p195 = pneg %p52
        %p196 = pneg %p76
        %p197 = pneg %p73
        %p198 = pneg %p97
        %p199 = pneg %p94
        %p200 = pneg %p125
        %p201 = pneg %p122
        %s202 = sand.u32 %s112, 1
        %s203 = scalar_lea.sflag [#allocation4], %s202
        %s204 = sand.u32 %s112, 1
        %s205 = smul.addr %s204, 16
        %s206 = scalar_lea.vmem [#allocation5], %s205
        %s207 = smul.u32 2, %s25
        %s208 = smul.u32 2, %s25
        %v210 = vld [vmem:[%s1] sm:$0xf]
        %v211 = vld [vmem:[%s184] sm:$0xff]
        %v212 = vld [vmem:[%s184 + $0x8] sm:$0xff]
        %v213 = vld [vmem:[%s184 + $0x10] sm:$0xff]
        %v214 = vld [vmem:[%s184 + $0x18] sm:$0xff]
        %v215 = vld [vmem:[%s184 + $0x20] sm:$0xff]
        %v216 = vld [vmem:[%s184 + $0x28] sm:$0xff]
        %v217 = vld [vmem:[%s2] sm:$0xff]
        %219 = vset.pattern.permute.xlu0 0
        %220 = vperm.xlu0 %219, %v217
        %v221 = vpop.permute.xlu0 %220
        %v229 = vunpack.c.l.b16 %v211
        %v230 = vunpack.c.h.b16 %v211
        %v231 = vunpack.c.l.b16 %v212
        %v232 = vunpack.c.h.b16 %v212
        %v233 = vunpack.c.l.b16 %v213
        %v234 = vunpack.c.h.b16 %v213
        %v235 = vunpack.c.l.b16 %v214
        %v236 = vunpack.c.h.b16 %v214
        %v237 = vunpack.c.l.b16 %v215
        %v238 = vunpack.c.h.b16 %v215
        %v239 = vunpack.c.l.b16 %v216
        %v240 = vunpack.c.h.b16 %v216
        %v241 = vpack.c.b16 %v231, %v229
        %v242 = vpack.c.b16 %v232, %v230
        %v243 = vpack.c.b16 %v235, %v233
        %v244 = vpack.c.b16 %v236, %v234
        %v245 = vpack.c.b16 %v239, %v237
        %v246 = vpack.c.b16 %v240, %v238
        %vm253 = vcmask 392192
        %v255 = vsel %vm253, %v210, 0
        %257 = vmatprep.subr.bf16.mxu0 %v242
        %258 = vmatpush1.bf16.msra.mxu0 %v241
        %259 = vmatprep.subr.bf16.mxu0 %v244
        %260 = vmatpush1.bf16.msra.mxu0 %v243
        %261 = vmatprep.subr.bf16.mxu0 %v246
        %262 = vmatpush1.bf16.msra.mxu0 %v245
        %263 = vmatprep.subr.bf16.mxu0 0
        %264 = vmatpush1.bf16.msra.mxu0 0
        %265 = vmatprep.subr.bf16.mxu0 0
        %266 = vmatpush1.bf16.msra.mxu0 0
        %267 = vmatprep.subr.bf16.mxu0 0
        %268 = vmatpush1.bf16.msra.mxu0 0
        %269 = vmatprep.subr.bf16.mxu0 0
        %270 = vmatpush1.bf16.msra.mxu0 0
        %271 = vmatprep.subr.bf16.mxu0 0
        %272 = vmatpush1.bf16.msra.mxu0 0
        %273 = vmatprep.subr.bf16.mxu0 0
        %274 = vmatpush1.bf16.msra.mxu0 0
        %275 = vmatprep.subr.bf16.mxu0 0
        %276 = vmatpush1.bf16.msra.mxu0 0
        %277 = vmatprep.subr.bf16.mxu0 0
        %278 = vmatpush1.bf16.msra.mxu0 0
        %279 = vmatprep.subr.bf16.mxu0 0
        %280 = vmatpush1.bf16.msra.mxu0 0
        %281 = vmatprep.subr.bf16.mxu0 0
        %282 = vmatpush1.bf16.msra.mxu0 0
        %283 = vmatprep.subr.bf16.mxu0 0
        %284 = vmatpush1.bf16.msra.mxu0 0
        %285 = vmatprep.subr.bf16.mxu0 0
        %286 = vmatpush1.bf16.msra.mxu0 0
        %287 = vmatprep.subr.bf16.mxu0 0
        %288 = vmatpush1.bf16.msra.mxu0 0
        %289 = vmatprep.mubr.bf16.mxu0 0
        %290 = vmatmul.mubr.bf16.gmra.mrb[0].mxu0 %v255
        %v291 = vpop.f32.mrb[0].mxu0
        %v292 = vadd.f32 %v221, %v291
        %v293 = vpop.f32.mrb[0].mxu0
        %v294 = vadd.f32 %v221, %v293
        %v295 = vpop.f32.mrb[0].mxu0
        %v296 = vpop.f32.mrb[0].mxu0
        %297 = vdwg.mxu0
        %298 = vst [vmem:[%s206] sm:$0xff] %v292
        %299 = vst [vmem:[%s206 + $0x8] sm:$0xff] %v294
        %s300 = sand.u32 %s112, 1
        %s301 = scalar_lea.sflag [#allocation4], %s300
        %s302 = sand.u32 %s112, 1
        %s303 = smul.addr %s302, 16
        %s304 = scalar_lea.vmem [#allocation5], %s303
        // Predicated region
        $region37: #{tpu_custom_call.1} parent=31 // pred_check
          %p305 = pneg %p122
        $region38: #{tpu_custom_call.1} parent=31 // pred_check_branch
          %307 = sbr.rel (%p305) target = $region40
        $region39: #{tpu_custom_call.1} parent=31 // pred_region
          %s308 = smul.u32 2, %s25
          %s310 = ssub.s32 256, 256
          %311 = vsyncadd %s301, %s310
          %s312 = smul.addr %s24, 2
          %s313 = sadd.s32 %s308, %s312
          %s314 = smul.addr %s313, 128
          %s315 = scalar_lea.hbm %s3, %s314
          %s317 = sshll.u32 %s304, 4
          %s318 = int_to_ptr.vmem [resolvable:$true] %s317
          %320 = dma.vmem_to_hbm [thread:$0]  %s318, 256, %s315, %s301
        $region40: #{tpu_custom_call.1} parent=31 // pred_fallthru
          _
      $region32: #{tpu_custom_call.1} parent=5 // pred_fallthru
        _
      %p321 = scmp.le.s32.totalorder 2, %s15
      // Predicated region
      $region41: #{tpu_custom_call.1} parent=5 // pred_check
        %p322 = pneg %p321
      $region42: #{tpu_custom_call.1} parent=5 // pred_check_branch
        %324 = sbr.rel (%p322) target = $region44
      $region43: #{tpu_custom_call.1} parent=5 // pred_region
        %s325 = ssub.s32 %s15, 2
        // Predicated region
        $region45: #{tpu_custom_call.1} parent=43 // pred_check
          %p326 = pneg %p128
        $region46: #{tpu_custom_call.1} parent=43 // pred_check_branch
          %328 = sbr.rel (%p326) target = $region48
        $region47: #{tpu_custom_call.1} parent=43 // pred_region
          %s329 = sand.u32 %s113, 1
          %s330 = scalar_lea.sflag [#allocation4], %s329
          %s331 = sand.u32 %s113, 1
          %s332 = smul.addr %s331, 16
          %s333 = scalar_lea.vmem [#allocation5], %s332
          %334 = dma.done %s330, 256
        $region48: #{tpu_custom_call.1} parent=43 // pred_fallthru
          _
      $region44: #{tpu_custom_call.1} parent=5 // pred_fallthru
        _
    $region6: #{tpu_custom_call.1} parent=1 // loop_footer
      %s19 = sadd.s32 1, %s15
    $region7: #{tpu_custom_call.1} parent=1 // loop_footer_branch
      %14 = sbr.rel target = $region3
    $region8: #{tpu_custom_call.1} parent=1 // loop_exit
      _
    %335 = vsyncpa [#allocation3], 1
    %s336 = scalar_lea.sflag [#allocation3], 1
    %337 = vsyncpa %s336, 1
    %338 = vsyncpa [#allocation4], 1
    %s339 = scalar_lea.sflag [#allocation4], 1
    %340 = vsyncpa %s339, 1

</llo_original>
